<compile_context>
chip_gen: v5e
topology: v5e:2x2
jax: 0.10.0
libtpu: 0.0.40
codegen_flags: <defaults>
</compile_context>

<pallas_src>
import functools

import jax
import jax.numpy as jnp
from jax import lax
from jax.experimental import pallas as pl
from jax.experimental.pallas import tpu as pltpu


# ---------------------------------------------------------------------------
# Generation-aware configuration helpers
# ---------------------------------------------------------------------------
def _device_kind():
    try:
        return jax.devices()[0].device_kind.lower()
    except Exception:
        return ""


def _vmem_limit_bytes(kind):
    # v5e/v6e: 128 MiB physical VMEM -> allow large tiles / resident Wh.
    # v7x: only 64 MiB physical (32 MiB default scoped) -> keep headroom.
    if "v5" in kind or "v6" in kind:
        return 96 * 1024 * 1024
    if "7" in kind:
        return 40 * 1024 * 1024
    return 32 * 1024 * 1024


def _pick_tile(n, candidates, prefer_even_count=False):
    """Largest candidate tile dividing n (optionally preferring an even count)."""
    divisors = [c for c in candidates if n >= c and n % c == 0]
    if prefer_even_count:
        for c in divisors:
            if (n // c) % 2 == 0:
                return c
    return divisors[0] if divisors else n


def _estimate_attention_vmem(n, f_out, tq, tk, wh_resident, wh_itemsize):
    """Rough live-VMEM estimate for the attention pass (bytes)."""
    est = 2 * tq * tk                       # adj int8 tiles, double-buffered
    est += 2 * (tq + tk) * 4                # f1 / f2 tiles
    est += 2 * tq * f_out * 4               # output tiles
    est += (2 * tq + tq * f_out) * 4        # m / l / acc scratch
    est += 3 * tq * tk * 4                  # e / p compiler temporaries
    if wh_resident:
        est += 2 * n * f_out * wh_itemsize  # fully resident Wh (worst case x2)
    else:
        est += 2 * tk * f_out * wh_itemsize
    return est


# ---------------------------------------------------------------------------
# Pass 1: projection. Wh = h @ W, f1 = Wh @ a1 (column), f2 = a2 . Wh (row).
# ---------------------------------------------------------------------------
def project_kernel(h_ref, w_ref, a1_ref, a2r_ref, wh_ref, f1_ref, f2_ref):
    wh = jnp.dot(h_ref[...], w_ref[...], preferred_element_type=jnp.float32)
    # f1 / f2 from the in-register f32 result (full precision) before Wh is
    # (possibly) downcast to bf16 for storage.
    f1_ref[...] = jnp.dot(wh, a1_ref[...], preferred_element_type=jnp.float32)
    # f2 produced directly as a (1, tr) ROW: contract the feature dim of Wh
    # against a2 -- no (N,1)->(1,N) transpose downstream.
    f2_ref[...] = lax.dot_general(
        a2r_ref[...], wh,
        dimension_numbers=(((1,), (1,)), ((), ())),
        preferred_element_type=jnp.float32)
    wh_ref[...] = wh.astype(wh_ref.dtype)


# ---------------------------------------------------------------------------
# Pass 2: masked attention with online (flash-style) row softmax.
# ---------------------------------------------------------------------------
def attention_kernel(counts_ref, f1_ref, f2_ref, wh_ref, adj_ref, out_ref,
                     m_ref, l_ref, acc_ref, *,
                     alpha, concat, use_bf16_agg, tk, wh_resident, skip_empty):
    i = pl.program_id(0)
    k = pl.program_id(1)

    @pl.when(k == 0)
    def _init():
        m_ref[...] = jnp.full_like(m_ref, -jnp.inf)
        l_ref[...] = jnp.zeros_like(l_ref)
        acc_ref[...] = jnp.zeros_like(acc_ref)

    def _compute():
        # e[i, j] = leakyrelu(f1[i] + f2[j]) for this (tq, tk) tile.
        e = f1_ref[...] + f2_ref[...]              # (tq,1)+(1,tk) -> (tq,tk)
        e = jnp.where(e > 0, e, alpha * e)         # LeakyReLU
        # Mask: compare the int8 adjacency directly (no f32 cast).
        e = jnp.where(adj_ref[...] > 0, e, -9.0e15)

        # Online softmax update.
        m_prev = m_ref[...]
        m_new = jnp.maximum(m_prev, jnp.max(e, axis=1, keepdims=True))
        corr = jnp.exp(m_prev - m_new)
        p = jnp.exp(e - m_new)
        l_ref[...] = corr * l_ref[...] + jnp.sum(p, axis=1, keepdims=True)

        if wh_resident:
            # Whole Wh lives in VMEM (constant index_map); slice the k tile.
            start = pl.multiple_of(k * tk, tk)
            wh_k = wh_ref[pl.ds(start, tk), :]
        else:
            wh_k = wh_ref[...]

        if use_bf16_agg:
            # bf16 MXU operands (Wh already stored as bf16), f32 accumulation.
            pv = jnp.dot(p.astype(jnp.bfloat16), wh_k,
                         preferred_element_type=jnp.float32)
        else:
            pv = jnp.dot(p, wh_k, preferred_element_type=jnp.float32)
        acc_ref[...] = corr * acc_ref[...] + pv
        m_ref[...] = m_new

    if skip_empty:
        # Skip entirely-masked adjacency tiles (exact when every node has at
        # least one neighbor, e.g. self-loops, as in the reference usage).
        pl.when(counts_ref[i, k] > 0)(_compute)
    else:
        _compute()

    @pl.when(k == pl.num_programs(1) - 1)
    def _finalize():
        l = l_ref[...]
        # EUP reciprocal seed + one Newton step (~f32 accurate, off the VALU
        # divide path).
        inv = pl.reciprocal(l, approx=True)
        inv = inv * (2.0 - l * inv)
        hp = acc_ref[...] * inv
        if skip_empty:
            # Guard rows whose every tile was skipped (fully isolated nodes).
            hp = jnp.where(l > 0.0, hp, 0.0)
        if concat:
            # ELU: exp only on the clamped-negative branch.
            hp = jnp.where(hp > 0, hp, jnp.exp(jnp.minimum(hp, 0.0)) - 1.0)
        out_ref[...] = hp.astype(out_ref.dtype)


# ---------------------------------------------------------------------------
# Wrapper
# ---------------------------------------------------------------------------
def gat_forward(h, adj, W, a, *, alpha=0.2, concat=True,
                use_bf16_agg=None, tq=None, tk=None,
                wh_resident=None, skip_empty_tiles=True):
    """Pallas GAT layer forward.

    h: (N, F_in), adj: (N, N), W: (F_in, F_out), a: (2*F_out, 1).
    Returns h_prime: (N, F_out) float32.
    """
    N, f_in = h.shape
    f_out = W.shape[1]

    kind = _device_kind()
    vmem_limit = _vmem_limit_bytes(kind)
    if use_bf16_agg is None:
        # v5e: bf16-native MXU, lowest HBM BW -> default to bf16 operands.
        use_bf16_agg = "v5" in kind

    # Lane-dense output / MXU columns: pad f_out up to a multiple of 128.
    # Zero padding is exact (padded Wh columns are 0, ELU(0)=0); sliced off.
    f_out_p = ((f_out + 127) // 128) * 128
    if f_out_p != f_out:
        W = jnp.pad(W, ((0, 0), (0, f_out_p - f_out)))
        a1 = jnp.pad(a[:f_out], ((0, f_out_p - f_out), (0, 0)))
        a2r = jnp.pad(a[f_out:].reshape(1, f_out), ((0, 0), (0, f_out_p - f_out)))
    else:
        a1 = a[:f_out]
        a2r = a[f_out:].reshape(1, f_out)

    wh_dtype = jnp.bfloat16 if use_bf16_agg else jnp.float32

    # --- Pass 1: projection ------------------------------------------------
    tr = _pick_tile(N, (512, 256, 128))
    if N % tr != 0:
        raise ValueError(f"N={N} not divisible by row tile {tr}")
    wh, f1, f2 = pl.pallas_call(
        project_kernel,
        out_shape=(jax.ShapeDtypeStruct((N, f_out_p), wh_dtype),
                   jax.ShapeDtypeStruct((N, 1), jnp.float32),
                   jax.ShapeDtypeStruct((1, N), jnp.float32)),
        grid=(N // tr,),
        in_specs=[pl.BlockSpec((tr, f_in), lambda i: (i, 0)),
                  pl.BlockSpec((f_in, f_out_p), lambda i: (0, 0)),
                  pl.BlockSpec((f_out_p, 1), lambda i: (0, 0)),
                  pl.BlockSpec((1, f_out_p), lambda i: (0, 0))],
        out_specs=(pl.BlockSpec((tr, f_out_p), lambda i: (i, 0)),
                   pl.BlockSpec((tr, 1), lambda i: (i, 0)),
                   pl.BlockSpec((1, tr), lambda i: (0, i))),
        compiler_params=pltpu.CompilerParams(
            dimension_semantics=("parallel",),
            vmem_limit_bytes=vmem_limit),
    )(h, W, a1, a2r)

    # --- Pass 2: tiled online-softmax attention -----------------------------
    prefer_even = "7" in kind  # v7x: 2 TensorCores share the "parallel" q axis.
    if tq is None:
        tq = _pick_tile(N, (512, 256, 128), prefer_even_count=prefer_even)
    if tk is None:
        tk = _pick_tile(N, (1024, 512, 256, 128))
    if N % tq != 0 or N % tk != 0:
        raise ValueError(f"N={N} not divisible by tiles tq={tq}, tk={tk}")
    nq, nk = N // tq, N // tk

    # adj as int8: 4x less HBM traffic than f32 for the dominant N*N stream.
    # (For multi-head / multi-layer reuse, pass an int8 adjacency directly so
    # the cast is amortized across calls.)
    adj_nz = adj > 0
    adj_i8 = adj if adj.dtype == jnp.int8 else adj_nz.astype(jnp.int8)

    # Per-(i,k) block nonzero counts for sparsity skipping (scalar prefetch).
    if skip_empty_tiles:
        counts = adj_nz.reshape(nq, tq, nk, tk).sum(axis=(1, 3), dtype=jnp.int32)
    else:
        counts = jnp.ones((nq, nk), jnp.int32)

    # Keep the whole Wh resident in VMEM (no per-q-tile re-streaming) when it
    # fits the per-generation budget, otherwise fall back to streamed k tiles.
    wh_itemsize = jnp.dtype(wh_dtype).itemsize
    if wh_resident is None:
        wh_resident = (_estimate_attention_vmem(N, f_out_p, tq, tk, True,
                                                wh_itemsize)
                       <= int(0.7 * vmem_limit))

    if wh_resident:
        wh_spec = pl.BlockSpec((N, f_out_p), lambda i, k, cnt: (0, 0))
    else:
        wh_spec = pl.BlockSpec((tk, f_out_p), lambda i, k, cnt: (k, 0))

    kernel = functools.partial(
        attention_kernel, alpha=alpha, concat=concat,
        use_bf16_agg=use_bf16_agg, tk=tk,
        wh_resident=wh_resident, skip_empty=skip_empty_tiles)

    out = pl.pallas_call(
        kernel,
        out_shape=jax.ShapeDtypeStruct((N, f_out_p), jnp.float32),
        grid_spec=pltpu.PrefetchScalarGridSpec(
            num_scalar_prefetch=1,
            grid=(nq, nk),
            in_specs=[
                pl.BlockSpec((tq, 1), lambda i, k, cnt: (i, 0)),   # f1 (query)
                pl.BlockSpec((1, tk), lambda i, k, cnt: (0, k)),   # f2 (key row)
                wh_spec,                                           # Wh
                pl.BlockSpec((tq, tk), lambda i, k, cnt: (i, k)),  # adj (int8)
            ],
            out_specs=pl.BlockSpec((tq, f_out_p), lambda i, k, cnt: (i, 0)),
            scratch_shapes=[pltpu.VMEM((tq, 1), jnp.float32),        # running max
                            pltpu.VMEM((tq, 1), jnp.float32),        # running sum
                            pltpu.VMEM((tq, f_out_p), jnp.float32)]),  # accumulator
        compiler_params=pltpu.CompilerParams(
            dimension_semantics=("parallel", "arbitrary"),
            vmem_limit_bytes=vmem_limit),
    )(counts, f1, f2, wh, adj_i8)

    return out if f_out_p == f_out else out[:, :f_out]


# ---------------------------------------------------------------------------
# Pure-JAX reference (matches the PyTorch forward, eval-mode dropout)
# ---------------------------------------------------------------------------
def gat_reference(h, adj, W, a, *, alpha=0.2, concat=True):
    f_out = W.shape[1]
    wh = h @ W
    f1 = wh @ a[:f_out]
    f2 = wh @ a[f_out:]
    e = f1 + f2.T
    e = jnp.where(e > 0, e, alpha * e)
    e = jnp.where(adj > 0, e, -9.0e15)
    att = jax.nn.softmax(e, axis=1)
    hp = att @ wh
    return jax.nn.elu(hp) if concat else hp


def xavier_uniform(key, shape, gain):
    fan_in, fan_out = shape[0], shape[1]
    bound = gain * jnp.sqrt(6.0 / (fan_in + fan_out))
    return jax.random.uniform(key, shape, jnp.float32, minval=-bound, maxval=bound)


def _make_inputs(key, n, f_in, f_out, gain=1.414, density=0.5):
    k_h, k_adj, k_w, k_a = jax.random.split(key, 4)
    W = xavier_uniform(k_w, (f_in, f_out), gain)
    a = xavier_uniform(k_a, (2 * f_out, 1), gain)
    h = jax.random.normal(k_h, (n, f_in), jnp.float32)
    adj = (jax.random.uniform(k_adj, (n, n)) < density).astype(jnp.float32)
    adj = jnp.maximum(adj, jnp.eye(n, dtype=jnp.float32))   # self-loops
    return h, adj, W, a


if __name__ == "__main__":
    ALPHA = 0.2  # LeakyReLU slope
    key = jax.random.PRNGKey(0)
    k1, k2, k3 = jax.random.split(key, 3)

    # --- Test 1: small shapes consistent with the module (single tile) ------
    N, F_IN, F_OUT = 8, 16, 32
    h, adj, W, a = _make_inputs(k1, N, F_IN, F_OUT)

    out = jax.block_until_ready(
        gat_forward(h, adj, W, a, alpha=ALPHA, concat=True, use_bf16_agg=False))
    ref = gat_reference(h, adj, W, a, alpha=ALPHA, concat=True)
    assert out.shape == (N, F_OUT)
    assert jnp.allclose(out, ref, atol=1e-4, rtol=1e-4), "mismatch vs reference (concat)"

    out_nc = jax.block_until_ready(
        gat_forward(h, adj, W, a, alpha=ALPHA, concat=False, use_bf16_agg=False))
    ref_nc = gat_reference(h, adj, W, a, alpha=ALPHA, concat=False)
    assert jnp.allclose(out_nc, ref_nc, atol=1e-4, rtol=1e-4), "mismatch (no concat)"

    # --- Test 2: multi-tile grid exercising the online softmax over k tiles -
    N2, F_IN2, F_OUT2 = 256, 64, 128
    h2, adj2, W2, a2 = _make_inputs(k2, N2, F_IN2, F_OUT2)
    ref2 = gat_reference(h2, adj2, W2, a2, alpha=ALPHA, concat=True)

    # Resident-Wh path.
    out2 = jax.block_until_ready(
        gat_forward(h2, adj2, W2, a2, alpha=ALPHA, concat=True,
                    tq=128, tk=128, use_bf16_agg=False))
    assert jnp.allclose(out2, ref2, atol=1e-4, rtol=1e-4), "mismatch (tiled, resident)"

    # Streamed-Wh fallback path.
    out2_s = jax.block_until_ready(
        gat_forward(h2, adj2, W2, a2, alpha=ALPHA, concat=True,
                    tq=128, tk=128, use_bf16_agg=False, wh_resident=False))
    assert jnp.allclose(out2_s, ref2, atol=1e-4, rtol=1e-4), "mismatch (tiled, streamed)"

    # bf16 MXU aggregation path (f32 accumulate) -- looser tolerance.
    out2_bf16 = jax.block_until_ready(
        gat_forward(h2, adj2, W2, a2, alpha=ALPHA, concat=True,
                    tq=128, tk=128, use_bf16_agg=True))
    assert jnp.allclose(out2_bf16, ref2, atol=5e-2, rtol=5e-2), "mismatch (bf16 agg)"

    # Block-sparse adjacency: only diagonal (128,128) tiles nonzero -> exercises
    # the scalar-prefetch pl.when tile-skipping path (exact w/ self-loops).
    blk = jnp.kron(jnp.eye(2, dtype=jnp.float32), jnp.ones((128, 128), jnp.float32))
    adj_sp = jnp.maximum(adj2 * blk, jnp.eye(N2, dtype=jnp.float32))
    out_sp = jax.block_until_ready(
        gat_forward(h2, adj_sp, W2, a2, alpha=ALPHA, concat=True,
                    tq=128, tk=128, use_bf16_agg=False))
    ref_sp = gat_reference(h2, adj_sp, W2, a2, alpha=ALPHA, concat=True)
    assert jnp.allclose(out_sp, ref_sp, atol=1e-4, rtol=1e-4), "mismatch (block-sparse)"

    # --- Test 3: default (large) tile selection ------------------------------
    N3, F_IN3, F_OUT3 = 512, 64, 128
    h3, adj3, W3, a3 = _make_inputs(k3, N3, F_IN3, F_OUT3)
    out3 = jax.block_until_ready(
        gat_forward(h3, adj3, W3, a3, alpha=ALPHA, concat=True, use_bf16_agg=False))
    ref3 = gat_reference(h3, adj3, W3, a3, alpha=ALPHA, concat=True)
    assert jnp.allclose(out3, ref3, atol=2e-4, rtol=1e-4), "mismatch (default tiles)"

    print("KERNEL_OK")
</pallas_src>

<mosaic_0001>
module attributes {stable_mosaic.version = 11 : i64} {
  func.func @project_kernel(%arg0: i32, %arg1: memref<8x16xf32, #tpu.memory_space<vmem>>, %arg2: memref<16x128xf32, #tpu.memory_space<vmem>>, %arg3: memref<128x1xf32, #tpu.memory_space<vmem>>, %arg4: memref<1x128xf32, #tpu.memory_space<vmem>>, %arg5: memref<8x128xf32, #tpu.memory_space<vmem>>, %arg6: memref<8x1xf32, #tpu.memory_space<vmem>>, %arg7: memref<1x8xf32, #tpu.memory_space<vmem>>) attributes {dimension_semantics = [#tpu.dimension_semantics<parallel>], iteration_bounds = array<i64: 1>, scalar_prefetch = 0 : i64, scratch_operands = 0 : i64, tpu.core_type = #tpu.core_type<tc>, window_params = [{transform_indices = @transform_0, window_bounds = array<i64: 8, 16>}, {pipeline_mode = #tpu.pipeline_mode<synchronous>, transform_indices = @transform_1, window_bounds = array<i64: 16, 128>}, {pipeline_mode = #tpu.pipeline_mode<synchronous>, transform_indices = @transform_2, window_bounds = array<i64: 128, 1>}, {pipeline_mode = #tpu.pipeline_mode<synchronous>, transform_indices = @transform_3, window_bounds = array<i64: 1, 128>}, {transform_indices = @transform_4, window_bounds = array<i64: 8, 128>}, {transform_indices = @transform_5, window_bounds = array<i64: 8, 1>}, {transform_indices = @transform_6, window_bounds = array<i64: 1, 8>}]} {
    %c0 = arith.constant 0 : index
    %c0_0 = arith.constant 0 : index
    %0 = vector.load %arg1[%c0, %c0_0] : memref<8x16xf32, #tpu.memory_space<vmem>>, vector<8x16xf32>
    %c0_1 = arith.constant 0 : index
    %c0_2 = arith.constant 0 : index
    %1 = vector.load %arg2[%c0_1, %c0_2] : memref<16x128xf32, #tpu.memory_space<vmem>>, vector<16x128xf32>
    %cst = arith.constant dense<0.000000e+00> : vector<8x128xf32>
    %2 = tpu.matmul %0, %1, %cst {dimension_numbers = #tpu.dot_dimension_numbers<[1], [0], [0], [1], [0, 0, 1, 1], [], []>} : vector<8x16xf32>, vector<16x128xf32>, vector<8x128xf32> -> vector<8x128xf32>
    %c0_3 = arith.constant 0 : index
    %c0_4 = arith.constant 0 : index
    %3 = vector.load %arg3[%c0_3, %c0_4] : memref<128x1xf32, #tpu.memory_space<vmem>>, vector<128x1xf32>
    %cst_5 = arith.constant dense<0.000000e+00> : vector<8x1xf32>
    %4 = tpu.matmul %2, %3, %cst_5 {dimension_numbers = #tpu.dot_dimension_numbers<[1], [0], [0], [1], [0, 0, 1, 1], [], []>} : vector<8x128xf32>, vector<128x1xf32>, vector<8x1xf32> -> vector<8x1xf32>
    %c0_6 = arith.constant 0 : index
    %c0_7 = arith.constant 0 : index
    %5 = vector.load %arg6[%c0_6, %c0_7] : memref<8x1xf32, #tpu.memory_space<vmem>>, vector<8x1xf32>
    tpu.vector_store %arg6[%c0_6, %c0_7], %4 {strides = array<i32>} : memref<8x1xf32, #tpu.memory_space<vmem>>, vector<8x1xf32>,
    %c0_8 = arith.constant 0 : index
    %c0_9 = arith.constant 0 : index
    %6 = vector.load %arg4[%c0_8, %c0_9] : memref<1x128xf32, #tpu.memory_space<vmem>>, vector<1x128xf32>
    %cst_10 = arith.constant dense<0.000000e+00> : vector<1x8xf32>
    %7 = tpu.matmul %6, %2, %cst_10 {dimension_numbers = #tpu.dot_dimension_numbers<[1], [1], [0], [0], [0, 0, 1, 0], [], []>} : vector<1x128xf32>, vector<8x128xf32>, vector<1x8xf32> -> vector<1x8xf32>
    %c0_11 = arith.constant 0 : index
    %c0_12 = arith.constant 0 : index
    %8 = vector.load %arg7[%c0_11, %c0_12] : memref<1x8xf32, #tpu.memory_space<vmem>>, vector<1x8xf32>
    tpu.vector_store %arg7[%c0_11, %c0_12], %7 {strides = array<i32>} : memref<1x8xf32, #tpu.memory_space<vmem>>, vector<1x8xf32>,
    %c0_13 = arith.constant 0 : index
    %c0_14 = arith.constant 0 : index
    %9 = vector.load %arg5[%c0_13, %c0_14] : memref<8x128xf32, #tpu.memory_space<vmem>>, vector<8x128xf32>
    tpu.vector_store %arg5[%c0_13, %c0_14], %2 {strides = array<i32>} : memref<8x128xf32, #tpu.memory_space<vmem>>, vector<8x128xf32>,
    return
  }
  func.func @transform_0(%arg0: i32) -> (i32, i32) {
    %c0_i32 = arith.constant 0 : i32
    %c0_i32_0 = arith.constant 0 : i32
    return %arg0, %c0_i32 : i32, i32
  }
  func.func @transform_1(%arg0: i32) -> (i32, i32) {
    %c0_i32 = arith.constant 0 : i32
    %c0_i32_0 = arith.constant 0 : i32
    %c0_i32_1 = arith.constant 0 : i32
    return %c0_i32, %c0_i32_0 : i32, i32
  }
  func.func @transform_2(%arg0: i32) -> (i32, i32) {
    %c0_i32 = arith.constant 0 : i32
    %c0_i32_0 = arith.constant 0 : i32
    %c0_i32_1 = arith.constant 0 : i32
    return %c0_i32, %c0_i32_0 : i32, i32
  }
  func.func @transform_3(%arg0: i32) -> (i32, i32) {
    %c0_i32 = arith.constant 0 : i32
    %c0_i32_0 = arith.constant 0 : i32
    %c0_i32_1 = arith.constant 0 : i32
    return %c0_i32, %c0_i32_0 : i32, i32
  }
  func.func @transform_4(%arg0: i32) -> (i32, i32) {
    %c0_i32 = arith.constant 0 : i32
    %c0_i32_0 = arith.constant 0 : i32
    return %arg0, %c0_i32 : i32, i32
  }
  func.func @transform_5(%arg0: i32) -> (i32, i32) {
    %c0_i32 = arith.constant 0 : i32
    %c0_i32_0 = arith.constant 0 : i32
    return %arg0, %c0_i32 : i32, i32
  }
  func.func @transform_6(%arg0: i32) -> (i32, i32) {
    %c0_i32 = arith.constant 0 : i32
    %c0_i32_0 = arith.constant 0 : i32
    return %c0_i32, %arg0 : i32, i32
  }
}

</mosaic_0001>

<llo_original>
// kernel: tpu_custom_call.1
$region0: #{tpu_custom_call.1}
  #allocation0 [shape = 'u32[]', space=smem, size = 0x4, offset = 0x4, fixed_abs, tag = 'smem constant byte address 0x4 - core index']
  #allocation1 [shape = 'u32[72,128]{1,0:T(1,128)}', space=vmem, size = 0x9000, scoped, tag = 'internal scratch']
  %s0 = inlined_call_operand.vmem [shape: f32[8,16], index: 0, kind: input, shape index: {}]
  %s1 = inlined_call_operand.vmem [shape: f32[16,128], index: 1, kind: input, shape index: {}]
  %s2 = inlined_call_operand.vmem [shape: f32[128,1], index: 2, kind: input, shape index: {}]
  %s3 = inlined_call_operand.vmem [shape: f32[1,128], index: 3, kind: input, shape index: {}]
  %s4 = inlined_call_operand.hbm [shape: f32[8,128], index: 4, kind: output, shape index: {0}]
  %s5 = inlined_call_operand.vmem [shape: f32[8,1], index: 5, kind: output, shape index: {1}]
  %s6 = inlined_call_operand.hbm [shape: f32[1,8], index: 6, kind: output, shape index: {2}]
  %7 = xla_tuple %s4, %s5, %s6
  %s8 = sld [smem:[#allocation0]]
  $region42: #{tpu_custom_call.1} parent=0
    _
  %s10 = ssub.s32 1, %s8
  %s11 = scalar_select 0, %s10, %s8
  $region1: #{tpu_custom_call.1} parent=0
    #allocation2 [shape = 'u8[4096]{0}', space=vmem, size = 0x1000, scoped, tag = 'output window, operand 0, single buffered']
    #allocation3 [shape = 's32[1]{0}', space=sflag, size = 0x4, scoped, tag = 'scoped memory for tpu_custom_call.1']
    #allocation4 [shape = 'u8[512]{0}', space=vmem, size = 0x400, scoped, tag = 'output window, operand 2, single buffered']
    #allocation5 [shape = 's32[1]{0}', space=sflag, size = 0x4, scoped, tag = 'scoped memory for tpu_custom_call.1']
    %12 = vsyncpa [#allocation3], 0
    %13 = vsyncpa [#allocation5], 0
    // Predicated region
    $region2: #{tpu_custom_call.1} parent=1 // pred_check
      _
    $region3: #{tpu_custom_call.1} parent=1 // pred_check_branch
      %15 = sbr.rel (0) target = $region5
    $region4: #{tpu_custom_call.1} parent=1 // pred_region
      _
    $region5: #{tpu_custom_call.1} parent=1 // pred_fallthru
      _
    // Predicated region
    $region6: #{tpu_custom_call.1} parent=1 // pred_check
      _
    $region7: #{tpu_custom_call.1} parent=1 // pred_check_branch
      %17 = sbr.rel (0) target = $region9
    $region8: #{tpu_custom_call.1} parent=1 // pred_region
      _
    $region9: #{tpu_custom_call.1} parent=1 // pred_fallthru
      _
    // Predicated region
    $region10: #{tpu_custom_call.1} parent=1 // pred_check
      _
    $region11: #{tpu_custom_call.1} parent=1 // pred_check_branch
      %19 = sbr.rel (0) target = $region13
    $region12: #{tpu_custom_call.1} parent=1 // pred_region
      _
    $region13: #{tpu_custom_call.1} parent=1 // pred_fallthru
      _
    // Predicated region
    $region14: #{tpu_custom_call.1} parent=1 // pred_check
      _
    $region15: #{tpu_custom_call.1} parent=1 // pred_check_branch
      %21 = sbr.rel (0) target = $region17
    $region16: #{tpu_custom_call.1} parent=1 // pred_region
      _
    $region17: #{tpu_custom_call.1} parent=1 // pred_fallthru
      _
    %v22 = vld [vmem:[%s0] sm:$0xff]
    %v23 = vld [vmem:[%s1] sm:$0xff]
    %v24 = vld [vmem:[%s1 + $0x8] sm:$0xff]
    %vm25 = vcmask 130048
    %v27 = vsel %vm25, %v22, 0
    %29 = vmatpush.msra.mxu0 0.0
    %30 = vmatpush.msra.mxu0 0.0
    %31 = vmatpush.msra.mxu0 0.0
    %32 = vmatpush.msra.mxu0 0.0
    %33 = vmatpush.msra.mxu0 0.0
    %34 = vmatpush.msra.mxu0 0.0
    %35 = vmatpush.msra.mxu0 0.0
    %36 = vmatpush.msra.mxu0 0.0
    %37 = vmatpush.msra.mxu0 0.0
    %38 = vmatpush.msra.mxu0 0.0
    %39 = vmatpush.msra.mxu0 0.0
    %40 = vmatpush.msra.mxu0 0.0
    %41 = vmatpush.msra.mxu0 0.0
    %42 = vmatpush.msra.mxu0 0.0
    %43 = vmatpush.msra.mxu0 %v24
    %44 = vmatpush.msra.mxu0 %v23
    %45 = vmatmul.f32.gmra.mxu0 %v27
    %v46 = vpop.f32.mrf.mxu0
    %v47 = vadd.f32 0.0, %v46
    %48 = vdwg.mxu0
    %v49 = vld [vmem:[%s2] sm:$0xff]
    %v50 = vld [vmem:[%s2 + $0x8] sm:$0xff]
    %v51 = vld [vmem:[%s2 + $0x10] sm:$0xff]
    %v52 = vld [vmem:[%s2 + $0x18] sm:$0xff]
    %v53 = vld [vmem:[%s2 + $0x20] sm:$0xff]
    %v54 = vld [vmem:[%s2 + $0x28] sm:$0xff]
    %v55 = vld [vmem:[%s2 + $0x30] sm:$0xff]
    %v56 = vld [vmem:[%s2 + $0x38] sm:$0xff]
    %v57 = vld [vmem:[%s2 + $0x40] sm:$0xff]
    %v58 = vld [vmem:[%s2 + $0x48] sm:$0xff]
    %v59 = vld [vmem:[%s2 + $0x50] sm:$0xff]
    %v60 = vld [vmem:[%s2 + $0x58] sm:$0xff]
    %v61 = vld [vmem:[%s2 + $0x60] sm:$0xff]
    %v62 = vld [vmem:[%s2 + $0x68] sm:$0xff]
    %v63 = vld [vmem:[%s2 + $0x70] sm:$0xff]
    %v64 = vld [vmem:[%s2 + $0x78] sm:$0xff]
    %65 = vmatpush.msra.mxu0 %v64
    %66 = vmatpush.msra.mxu0 %v63
    %67 = vmatpush.msra.mxu0 %v62
    %68 = vmatpush.msra.mxu0 %v61
    %69 = vmatpush.msra.mxu0 %v60
    %70 = vmatpush.msra.mxu0 %v59
    %71 = vmatpush.msra.mxu0 %v58
    %72 = vmatpush.msra.mxu0 %v57
    %73 = vmatpush.msra.mxu0 %v56
    %74 = vmatpush.msra.mxu0 %v55
    %75 = vmatpush.msra.mxu0 %v54
    %76 = vmatpush.msra.mxu0 %v53
    %77 = vmatpush.msra.mxu0 %v52
    %78 = vmatpush.msra.mxu0 %v51
    %79 = vmatpush.msra.mxu0 %v50
    %80 = vmatpush.msra.mxu0 %v49
    %81 = vmatmul.f32.gmra.mxu0 %v47
    %v82 = vpop.f32.mrf.mxu0
    %v83 = vadd.f32 0.0, %v82
    %84 = vdwg.mxu0
    %vm85 = vcmask 7168
    %86 = vst.msk [vmem:[%s5] sm:$0xff] %vm85, %v83
    %v87 = vld [vmem:[%s3] sm:$0x1]
    %88 = vmatpush.xpose.msra.mxu0 0.0
    %89 = vmatpush.xpose.msra.mxu0 0.0
    %90 = vmatpush.xpose.msra.mxu0 0.0
    %91 = vmatpush.xpose.msra.mxu0 0.0
    %92 = vmatpush.xpose.msra.mxu0 0.0
    %93 = vmatpush.xpose.msra.mxu0 0.0
    %94 = vmatpush.xpose.msra.mxu0 0.0
    %95 = vmatpush.xpose.msra.mxu0 0.0
    %96 = vmatpush.xpose.msra.mxu0 0.0
    %97 = vmatpush.xpose.msra.mxu0 0.0
    %98 = vmatpush.xpose.msra.mxu0 0.0
    %99 = vmatpush.xpose.msra.mxu0 0.0
    %100 = vmatpush.xpose.msra.mxu0 0.0
    %101 = vmatpush.xpose.msra.mxu0 0.0
    %102 = vmatpush.xpose.msra.mxu0 0.0
    %103 = vmatpush.xpose.msra.mxu0 %v47
    %104 = vmatmul.f32.gmra.mxu0 %v87
    %v105 = vpop.f32.mrf.mxu0
    %v106 = vadd.f32 0.0, %v105
    %107 = vdwg.mxu0
    %vm108 = vcmask 57344
    %109 = vst.msk [vmem:[#allocation4] sm:$0x1] %vm108, %v106
    %110 = vst [vmem:[#allocation2] sm:$0xff] %v47
    // Predicated region
    $region18: #{tpu_custom_call.1} parent=1 // pred_check
      _
    $region19: #{tpu_custom_call.1} parent=1 // pred_check_branch
      %112 = sbr.rel (0) target = $region21
    $region20: #{tpu_custom_call.1} parent=1 // pred_region
      %114 = vsyncadd [#allocation3], 0
      %s116 = sshll.u32 [#allocation2], 4
      %s117 = int_to_ptr.vmem [resolvable:$true] %s116
      %s118 = sshll.u32 %s4, 4
      %s119 = int_to_ptr.hbm [resolvable:$true] %s118
      %121 = dma.vmem_to_hbm [thread:$0]  %s117, 128, %s119, [#allocation3]
    $region21: #{tpu_custom_call.1} parent=1 // pred_fallthru
      _
    // Predicated region
    $region22: #{tpu_custom_call.1} parent=1 // pred_check
      _
    $region23: #{tpu_custom_call.1} parent=1 // pred_check_branch
      %123 = sbr.rel (0) target = $region25
    $region24: #{tpu_custom_call.1} parent=1 // pred_region
      _
    $region25: #{tpu_custom_call.1} parent=1 // pred_fallthru
      _
    // Predicated region
    $region26: #{tpu_custom_call.1} parent=1 // pred_check
      _
    $region27: #{tpu_custom_call.1} parent=1 // pred_check_branch
      %125 = sbr.rel (0) target = $region29
    $region28: #{tpu_custom_call.1} parent=1 // pred_region
      %127 = vsyncadd [#allocation5], 0
      %s129 = sshll.u32 [#allocation4], 4
      %s130 = int_to_ptr.vmem [resolvable:$true] %s129
      %s131 = sshll.u32 %s6, 4
      %s132 = int_to_ptr.hbm [resolvable:$true] %s131
      %134 = dma.vmem_to_hbm [thread:$0]  %s130, 16, %s132, [#allocation5]
    $region29: #{tpu_custom_call.1} parent=1 // pred_fallthru
      _
    // Predicated region
    $region30: #{tpu_custom_call.1} parent=1 // pred_check
      _
    $region31: #{tpu_custom_call.1} parent=1 // pred_check_branch
      %136 = sbr.rel (0) target = $region33
    $region32: #{tpu_custom_call.1} parent=1 // pred_region
      %138 = dma.done [#allocation3], 128
    $region33: #{tpu_custom_call.1} parent=1 // pred_fallthru
      _
    // Predicated region
    $region34: #{tpu_custom_call.1} parent=1 // pred_check
      _
    $region35: #{tpu_custom_call.1} parent=1 // pred_check_branch
      %140 = sbr.rel (0) target = $region37
    $region36: #{tpu_custom_call.1} parent=1 // pred_region
      _
    $region37: #{tpu_custom_call.1} parent=1 // pred_fallthru
      _
    // Predicated region
    $region38: #{tpu_custom_call.1} parent=1 // pred_check
      _
    $region39: #{tpu_custom_call.1} parent=1 // pred_check_branch
      %142 = sbr.rel (0) target = $region41
    $region40: #{tpu_custom_call.1} parent=1 // pred_region
      %144 = dma.done [#allocation5], 16
    $region41: #{tpu_custom_call.1} parent=1 // pred_fallthru
      _
    %145 = vsyncpa [#allocation3], 1
    %146 = vsyncpa [#allocation5], 1

</llo_original>
